<compile_context>
chip_gen: v7x
topology: tpu7x:2x2x1
jax: 0.10.0
libtpu: 0.0.40
codegen_flags: <defaults>
</compile_context>

<pallas_src>
import math

import jax
import jax.numpy as jnp
from jax.experimental import pallas as pl
from jax.experimental.pallas import tpu as pltpu


_GELU_C = math.sqrt(2.0 / math.pi)


def _gelu_tanh(z):
    # tanh-approx GELU, matches the PyTorch module's staticmethod.
    return 0.5 * z * (1.0 + jnp.tanh(_GELU_C * (z + 0.044715 * z * z * z)))


def feed_forward_kernel(x_ref, w1_ref, b1_ref, w2_ref, b2_ref, o_ref, acc_ref):
    """One (row-block i, hidden-block j) grid step.

    z_j   = GELU(x_i @ W1[:, j] + b1[j])   (GELU dtype = b1 dtype: bf16 on
                                             v6e/v7x, fp32 on v5e)
    acc_i += z_j @ W2[j, :]                 (fp32 accumulation over j)
    out_i  = acc_i + b2                     (only on the last hidden block)
    """
    j = pl.program_id(1)

    @pl.when(j == 0)
    def _():
        acc_ref[...] = jnp.zeros_like(acc_ref)

    # First matmul on the MXU: bf16 operands, fp32 accumulation.
    z = jnp.dot(x_ref[...], w1_ref[...], preferred_element_type=jnp.float32)
    # Bias add + tanh-GELU in b1's dtype (bf16 where the VPU/EUP support it).
    z = _gelu_tanh(z.astype(b1_ref.dtype) + b1_ref[...])
    # TODO(synk): training-mode dropout (pltpu.prng_seed/prng_random_bits) not
    # implemented; eval-mode dropout is the identity.

    # Second matmul: bf16 operands into the MXU, fp32 accumulation.
    acc_ref[...] += jnp.dot(z.astype(w2_ref.dtype), w2_ref[...],
                            preferred_element_type=jnp.float32)

    # Epilogue only once per output block (output stays VMEM-resident over j).
    @pl.when(j == pl.num_programs(1) - 1)
    def _():
        o_ref[...] = (acc_ref[...] + b2_ref[...]).astype(o_ref.dtype)


def _round_up(a, b):
    return (a + b - 1) // b * b


def _device_plan():
    """Per-TPU-generation tile/VMEM plan."""
    try:
        kind = jax.devices()[0].device_kind.lower()
    except Exception:  # pragma: no cover - defensive
        kind = ""
    if "v7" in kind or "tpu7" in kind or "7x" in kind:
        # 2 TensorCores/chip, 64 MiB VMEM per core, bf16 VPU/EUP.
        return dict(block_rows=512, vmem_cap=52 * 1024 * 1024,
                    min_row_blocks=2, gelu_dtype=jnp.bfloat16)
    if "v6" in kind:
        # 128 MiB VMEM, bf16 VPU/EUP.
        return dict(block_rows=512, vmem_cap=100 * 1024 * 1024,
                    min_row_blocks=1, gelu_dtype=jnp.bfloat16)
    if "v5" in kind or "v4" in kind or "v3" in kind:
        # 128 MiB VMEM, no bf16 VPU/EUP -> keep GELU math in fp32.
        return dict(block_rows=512, vmem_cap=100 * 1024 * 1024,
                    min_row_blocks=1, gelu_dtype=jnp.float32)
    # Unknown generation: conservative VMEM cap, bf16 elementwise.
    return dict(block_rows=512, vmem_cap=52 * 1024 * 1024,
                min_row_blocks=2, gelu_dtype=jnp.bfloat16)


def prepare_feed_forward_params(w1, b1, w2, b2, *, block_mid=512,
                                compute_dtype=jnp.bfloat16, gelu_dtype=None):
    """One-time pad + cast of the FFN weights (hoisted out of the forward pass).

    w1: (in_features, middle_features)  == torch layer_1.weight.T
    b1: (middle_features,)
    w2: (middle_features, in_features)  == torch layer_2.weight.T
    b2: (in_features,)
    """
    if gelu_dtype is None:
        gelu_dtype = _device_plan()["gelu_dtype"]

    f_in, mid = w1.shape
    # Hidden tiling: lane aligned, padded to a multiple of the hidden block so
    # tmid never falls back to 128/256 (full-depth MXU feeds, fewer red. steps).
    tmid = min(block_mid, _round_up(mid, 128))
    mid_pad = _round_up(mid, tmid)

    def pad_to(a, shape):
        pads = [(0, t - s) for s, t in zip(a.shape, shape)]
        if any(p[1] for p in pads):
            a = jnp.pad(a, pads)
        return a

    # Padded hidden columns are zero in W1/b1 and zero rows in W2 -> inert.
    w1_p = pad_to(w1.astype(compute_dtype), (f_in, mid_pad))
    w2_p = pad_to(w2.astype(compute_dtype), (mid_pad, f_in))
    b1_p = pad_to(b1.astype(gelu_dtype).reshape(1, -1), (1, mid_pad))
    b2_p = b2.astype(jnp.float32).reshape(1, f_in)

    return dict(w1=w1_p, b1=b1_p, w2=w2_p, b2=b2_p,
                f_in=f_in, tmid=tmid, mid_pad=mid_pad,
                compute_dtype=compute_dtype)


def feed_forward_prepared(x, params, *, block_rows=None, out_dtype=jnp.bfloat16):
    """FeedForward forward pass using pre-padded / pre-cast weights."""
    plan = _device_plan()
    if block_rows is None:
        block_rows = plan["block_rows"]

    f_in = params["f_in"]
    tmid = params["tmid"]
    mid_pad = params["mid_pad"]
    compute_dtype = params["compute_dtype"]

    orig_shape = x.shape
    xm = x.reshape(-1, f_in)
    m = xm.shape[0]

    # Row tiling (sublane aligned).
    tm = block_rows if m >= block_rows else _round_up(m, 8)
    # Guarantee >= min_row_blocks row blocks (feeds both TCs on v7x).
    if plan["min_row_blocks"] > 1 and m >= 8 * plan["min_row_blocks"]:
        tm = min(tm, _round_up(-(-m // plan["min_row_blocks"]), 8))

    cd_bytes = jnp.dtype(compute_dtype).itemsize
    out_bytes = jnp.dtype(out_dtype).itemsize
    gelu_bytes = jnp.dtype(params["b1"].dtype).itemsize

    def vmem_est(tm_):
        return (2 * tm_ * f_in * cd_bytes              # x tile (double-buffered)
                + 2 * f_in * tmid * cd_bytes           # W1 hidden block
                + 2 * tmid * f_in * cd_bytes           # W2 hidden block
                + 2 * tmid * gelu_bytes + 2 * f_in * 4  # biases
                + 2 * tm_ * f_in * out_bytes           # output tile
                + tm_ * f_in * 4                       # fp32 accumulator scratch
                + tm_ * tmid * (4 + gelu_bytes))       # GELU intermediate

    # Shrink the row block until the tile plan fits the per-generation cap.
    while tm > 8 and vmem_est(tm) > plan["vmem_cap"]:
        tm = _round_up(tm // 2, 8)
    m_pad = _round_up(m, tm)

    vmem_limit = int(min(max(int(vmem_est(tm) * 1.3) + (2 << 20), 16 << 20),
                         plan["vmem_cap"]))

    x_p = xm.astype(compute_dtype)
    if m_pad != m:
        x_p = jnp.pad(x_p, ((0, m_pad - m), (0, 0)))

    grid = (m_pad // tm, mid_pad // tmid)

    y = pl.pallas_call(
        feed_forward_kernel,
        out_shape=jax.ShapeDtypeStruct((m_pad, f_in), out_dtype),
        grid_spec=pltpu.PrefetchScalarGridSpec(
            num_scalar_prefetch=0,
            grid=grid,
            in_specs=[
                pl.BlockSpec((tm, f_in), lambda i, j: (i, 0)),     # x row block
                pl.BlockSpec((f_in, tmid), lambda i, j: (0, j)),   # W1 hidden block
                pl.BlockSpec((1, tmid), lambda i, j: (0, j)),      # b1 hidden block
                pl.BlockSpec((tmid, f_in), lambda i, j: (j, 0)),   # W2 hidden block
                pl.BlockSpec((1, f_in), lambda i, j: (0, 0)),      # b2 (resident)
            ],
            out_specs=pl.BlockSpec((tm, f_in), lambda i, j: (i, 0)),
            scratch_shapes=[pltpu.VMEM((tm, f_in), jnp.float32)],
        ),
        compiler_params=pltpu.CompilerParams(
            dimension_semantics=("parallel", "arbitrary"),
            vmem_limit_bytes=vmem_limit,
        ),
    )(x_p, params["w1"], params["b1"], params["w2"], params["b2"])

    return y[:m].reshape(orig_shape)


def feed_forward(x, w1, b1, w2, b2, **kwargs):
    """Convenience wrapper: prepares (pads/casts) weights, then runs the kernel.

    For repeated calls, call prepare_feed_forward_params() once and use
    feed_forward_prepared() directly.
    """
    params = prepare_feed_forward_params(w1, b1, w2, b2)
    return feed_forward_prepared(x, params, **kwargs)


def feed_forward_ref(x, w1, b1, w2, b2):
    """Pure-JAX fp32 reference matching the PyTorch module."""
    z = x @ w1 + b1
    z = 0.5 * z * (1.0 + jnp.tanh(_GELU_C * (z + 0.044715 * z ** 3)))
    return z @ w2 + b2


def init_params(key, in_features, middle_features):
    k1, k2, k3, k4 = jax.random.split(key, 4)
    std = 0.02  # nn.init.normal_(weight, std=0.02)
    bnd1 = 1.0 / math.sqrt(in_features)       # PyTorch default bias init bounds
    bnd2 = 1.0 / math.sqrt(middle_features)
    return {
        # Stored as (in, out) == torch_weight.T so the kernel does x @ W + b.
        "w1": jax.random.normal(k1, (in_features, middle_features), jnp.float32) * std,
        "b1": jax.random.uniform(k2, (middle_features,), jnp.float32, -bnd1, bnd1),
        "w2": jax.random.normal(k3, (middle_features, in_features), jnp.float32) * std,
        "b2": jax.random.uniform(k4, (in_features,), jnp.float32, -bnd2, bnd2),
    }


if __name__ == "__main__":
    # batch=2, seq=8, in_features=128, middle_features=512 (standard 4x FFN).
    B, S, F_IN, F_MID = 2, 8, 128, 512

    key = jax.random.PRNGKey(0)
    k_x, k_p = jax.random.split(key)

    x = jax.random.normal(k_x, (B, S, F_IN), jnp.float32)
    params = init_params(k_p, F_IN, F_MID)

    prepared = prepare_feed_forward_params(
        params["w1"], params["b1"], params["w2"], params["b2"])
    y = feed_forward_prepared(x, prepared)
    y = jax.block_until_ready(y)

    y_ref = feed_forward_ref(x, params["w1"], params["b1"],
                             params["w2"], params["b2"])

    assert y.shape == x.shape
    y32 = y.astype(jnp.float32)
    assert bool(jnp.all(jnp.isfinite(y32)))
    # bf16 MXU operands + bf16 output: loose tolerance is deliberate.
    err = float(jnp.max(jnp.abs(y32 - y_ref)))
    assert err < 2e-2, f"max abs err {err}"
    print("KERNEL_OK")
</pallas_src>

<mosaic_0001>
module attributes {stable_mosaic.version = 11 : i64} {
  func.func @feed_forward_kernel(%arg0: i32, %arg1: i32, %arg2: memref<8x128xbf16, #tpu.memory_space<vmem>>, %arg3: memref<128x512xbf16, #tpu.memory_space<vmem>>, %arg4: memref<1x512xbf16, #tpu.memory_space<vmem>>, %arg5: memref<512x128xbf16, #tpu.memory_space<vmem>>, %arg6: memref<1x128xf32, #tpu.memory_space<vmem>>, %arg7: memref<8x128xbf16, #tpu.memory_space<vmem>>, %arg8: memref<8x128xf32, #tpu.memory_space<vmem>>) attributes {dimension_semantics = [#tpu.dimension_semantics<parallel>, #tpu.dimension_semantics<arbitrary>], iteration_bounds = array<i64: 2, 1>, scalar_prefetch = 0 : i64, scratch_operands = 1 : i64, tpu.core_type = #tpu.core_type<tc>, window_params = [{transform_indices = @transform_0, window_bounds = array<i64: 8, 128>}, {transform_indices = @transform_1, window_bounds = array<i64: 128, 512>}, {transform_indices = @transform_2, window_bounds = array<i64: 1, 512>}, {transform_indices = @transform_3, window_bounds = array<i64: 512, 128>}, {pipeline_mode = #tpu.pipeline_mode<synchronous>, transform_indices = @transform_4, window_bounds = array<i64: 1, 128>}, {transform_indices = @transform_5, window_bounds = array<i64: 8, 128>}]} {
    %c0_i32 = arith.constant 0 : i32
    %0 = arith.cmpi eq, %arg1, %c0_i32 : i32
    %1 = arith.extui %0 : i1 to i32
    %c0_i32_0 = arith.constant 0 : i32
    %2 = arith.cmpi ne, %1, %c0_i32_0 : i32
    scf.if %2 {
      %cst_19 = arith.constant 0.000000e+00 : f32
      %31 = vector.broadcast %cst_19 : f32 to vector<8x128xf32>
      %c0_20 = arith.constant 0 : index
      %c0_21 = arith.constant 0 : index
      %32 = vector.load %arg8[%c0_20, %c0_21] : memref<8x128xf32, #tpu.memory_space<vmem>>, vector<8x128xf32>
      tpu.vector_store %arg8[%c0_20, %c0_21], %31 {strides = array<i32>} : memref<8x128xf32, #tpu.memory_space<vmem>>, vector<8x128xf32>,
    } else {
    }
    %c0 = arith.constant 0 : index
    %c0_1 = arith.constant 0 : index
    %3 = vector.load %arg2[%c0, %c0_1] : memref<8x128xbf16, #tpu.memory_space<vmem>>, vector<8x128xbf16>
    %c0_2 = arith.constant 0 : index
    %c0_3 = arith.constant 0 : index
    %4 = vector.load %arg3[%c0_2, %c0_3] : memref<128x512xbf16, #tpu.memory_space<vmem>>, vector<128x512xbf16>
    %cst = arith.constant dense<0.000000e+00> : vector<8x512xf32>
    %5 = tpu.matmul %3, %4, %cst {dimension_numbers = #tpu.dot_dimension_numbers<[1], [0], [0], [1], [0, 0, 1, 1], [], []>} : vector<8x128xbf16>, vector<128x512xbf16>, vector<8x512xf32> -> vector<8x512xf32>
    %6 = arith.truncf %5 : vector<8x512xf32> to vector<8x512xbf16>
    %c0_4 = arith.constant 0 : index
    %c0_5 = arith.constant 0 : index
    %7 = vector.load %arg4[%c0_4, %c0_5] : memref<1x512xbf16, #tpu.memory_space<vmem>>, vector<1x512xbf16>
    %8 = vector.broadcast %7 : vector<1x512xbf16> to vector<8x512xbf16>
    %9 = arith.addf %6, %8 : vector<8x512xbf16>
    %cst_6 = arith.constant 5.000000e-01 : bf16
    %10 = vector.broadcast %cst_6 : bf16 to vector<8x512xbf16>
    %11 = arith.mulf %10, %9 : vector<8x512xbf16>
    %cst_7 = arith.constant 4.467770e-02 : bf16
    %12 = vector.broadcast %cst_7 : bf16 to vector<8x512xbf16>
    %13 = arith.mulf %12, %9 : vector<8x512xbf16>
    %14 = arith.mulf %13, %9 : vector<8x512xbf16>
    %15 = arith.mulf %14, %9 : vector<8x512xbf16>
    %16 = arith.addf %9, %15 : vector<8x512xbf16>
    %cst_8 = arith.constant 7.968750e-01 : bf16
    %17 = vector.broadcast %cst_8 : bf16 to vector<8x512xbf16>
    %18 = arith.mulf %17, %16 : vector<8x512xbf16>
    %19 = math.tanh %18 : vector<8x512xbf16>
    %cst_9 = arith.constant 1.000000e+00 : bf16
    %20 = vector.broadcast %cst_9 : bf16 to vector<8x512xbf16>
    %21 = arith.addf %20, %19 : vector<8x512xbf16>
    %22 = arith.mulf %11, %21 : vector<8x512xbf16>
    %c0_10 = arith.constant 0 : index
    %c0_11 = arith.constant 0 : index
    %23 = vector.load %arg8[%c0_10, %c0_11] : memref<8x128xf32, #tpu.memory_space<vmem>>, vector<8x128xf32>
    %c0_12 = arith.constant 0 : index
    %c0_13 = arith.constant 0 : index
    %24 = vector.load %arg5[%c0_12, %c0_13] : memref<512x128xbf16, #tpu.memory_space<vmem>>, vector<512x128xbf16>
    %cst_14 = arith.constant dense<0.000000e+00> : vector<8x128xf32>
    %25 = tpu.matmul %22, %24, %cst_14 {dimension_numbers = #tpu.dot_dimension_numbers<[1], [0], [0], [1], [0, 0, 1, 1], [], []>} : vector<8x512xbf16>, vector<512x128xbf16>, vector<8x128xf32> -> vector<8x128xf32>
    %26 = arith.addf %23, %25 : vector<8x128xf32>
    %c0_15 = arith.constant 0 : index
    %c0_16 = arith.constant 0 : index
    %27 = vector.load %arg8[%c0_15, %c0_16] : memref<8x128xf32, #tpu.memory_space<vmem>>, vector<8x128xf32>
    tpu.vector_store %arg8[%c0_15, %c0_16], %26 {strides = array<i32>} : memref<8x128xf32, #tpu.memory_space<vmem>>, vector<8x128xf32>,
    %c0_i32_17 = arith.constant 0 : i32
    %28 = arith.cmpi eq, %arg1, %c0_i32_17 : i32
    %29 = arith.extui %28 : i1 to i32
    %c0_i32_18 = arith.constant 0 : i32
    %30 = arith.cmpi ne, %29, %c0_i32_18 : i32
    scf.if %30 {
      %c0_19 = arith.constant 0 : index
      %c0_20 = arith.constant 0 : index
      %31 = vector.load %arg8[%c0_19, %c0_20] : memref<8x128xf32, #tpu.memory_space<vmem>>, vector<8x128xf32>
      %c0_21 = arith.constant 0 : index
      %c0_22 = arith.constant 0 : index
      %32 = vector.load %arg6[%c0_21, %c0_22] : memref<1x128xf32, #tpu.memory_space<vmem>>, vector<1x128xf32>
      %33 = vector.broadcast %32 : vector<1x128xf32> to vector<8x128xf32>
      %34 = arith.addf %31, %33 : vector<8x128xf32>
      %35 = arith.truncf %34 : vector<8x128xf32> to vector<8x128xbf16>
      %c0_23 = arith.constant 0 : index
      %c0_24 = arith.constant 0 : index
      %36 = vector.load %arg7[%c0_23, %c0_24] : memref<8x128xbf16, #tpu.memory_space<vmem>>, vector<8x128xbf16>
      tpu.vector_store %arg7[%c0_23, %c0_24], %35 {strides = array<i32>} : memref<8x128xbf16, #tpu.memory_space<vmem>>, vector<8x128xbf16>,
    } else {
    }
    return
  }
  func.func @transform_0(%arg0: i32, %arg1: i32) -> (i32, i32) {
    %c0_i32 = arith.constant 0 : i32
    %c0_i32_0 = arith.constant 0 : i32
    return %arg0, %c0_i32 : i32, i32
  }
  func.func @transform_1(%arg0: i32, %arg1: i32) -> (i32, i32) {
    %c0_i32 = arith.constant 0 : i32
    %c0_i32_0 = arith.constant 0 : i32
    return %c0_i32, %arg1 : i32, i32
  }
  func.func @transform_2(%arg0: i32, %arg1: i32) -> (i32, i32) {
    %c0_i32 = arith.constant 0 : i32
    %c0_i32_0 = arith.constant 0 : i32
    return %c0_i32, %arg1 : i32, i32
  }
  func.func @transform_3(%arg0: i32, %arg1: i32) -> (i32, i32) {
    %c0_i32 = arith.constant 0 : i32
    %c0_i32_0 = arith.constant 0 : i32
    return %arg1, %c0_i32 : i32, i32
  }
  func.func @transform_4(%arg0: i32, %arg1: i32) -> (i32, i32) {
    %c0_i32 = arith.constant 0 : i32
    %c0_i32_0 = arith.constant 0 : i32
    %c0_i32_1 = arith.constant 0 : i32
    return %c0_i32, %c0_i32_0 : i32, i32
  }
  func.func @transform_5(%arg0: i32, %arg1: i32) -> (i32, i32) {
    %c0_i32 = arith.constant 0 : i32
    %c0_i32_0 = arith.constant 0 : i32
    return %arg0, %c0_i32 : i32, i32
  }
}

</mosaic_0001>

<llo_original>
// kernel: tpu_custom_call.1
$region0: #{tpu_custom_call.1}
  #allocation0 [shape = 'u32[]', space=smem, size = 0x4, offset = 0x4, fixed_abs, tag = 'smem constant byte address 0x4 - core index']
  #allocation1 [shape = 'u32[144,128]{1,0:T(1,128)}', space=vmem, size = 0x12000, scoped, tag = 'internal scratch']
  #allocation2 [shape = 'f32[8,128]{1,0:T(8,128)}', space=vmem, size = 0x1000, scoped, tag = 'scratch operand']
  %s0 = inlined_call_operand.hbm [shape: bf16[16,128], index: 0, kind: input, shape index: {}]
  %s1 = inlined_call_operand.hbm [shape: bf16[128,512], index: 1, kind: input, shape index: {}]
  %s2 = inlined_call_operand.vmem [shape: bf16[1,512], index: 2, kind: input, shape index: {}]
  %s3 = inlined_call_operand.hbm [shape: bf16[512,128], index: 3, kind: input, shape index: {}]
  %s4 = inlined_call_operand.vmem [shape: f32[1,128], index: 4, kind: input, shape index: {}]
  %s5 = inlined_call_operand.hbm [shape: bf16[16,128], index: 5, kind: output, shape index: {}]
  %s6 = sld [smem:[#allocation0]]
  $region73: #{tpu_custom_call.1} parent=0
    _
  %s8 = ssub.s32 1, %s6
  %s9 = scalar_select 0, %s8, %s6
  $region1: #{tpu_custom_call.1} parent=0
    #allocation3 [shape = 'u8[4096]{0}', space=vmem, size = 0x1000, scoped, tag = 'input window, operand 0']
    #allocation4 [shape = 's32[2]{0}', space=sflag, size = 0x8, scoped, tag = 'scoped memory for tpu_custom_call.1']
    #allocation5 [shape = 's32[2]{0}', space=sflag, size = 0x8, scoped, tag = 'scoped memory for tpu_custom_call.1']
    #allocation6 [shape = 'u8[131072]{0}', space=vmem, size = 0x20000, scoped, tag = 'input window, operand 1, single buffered']
    #allocation7 [shape = 's32[1]{0}', space=sflag, size = 0x4, scoped, tag = 'scoped memory for tpu_custom_call.1']
    #allocation8 [shape = 'u8[131072]{0}', space=vmem, size = 0x20000, scoped, tag = 'input window, operand 3, single buffered']
    #allocation9 [shape = 'u8[4096]{0}', space=vmem, size = 0x1000, scoped, tag = 'output window, operand 0']
    %10 = vsyncpa [#allocation4], 0
    %s11 = scalar_lea.sflag [#allocation4], 1
    %12 = vsyncpa %s11, 0
    %13 = vsyncpa [#allocation7], 0
    %14 = vsyncpa [#allocation5], 0
    %s15 = scalar_lea.sflag [#allocation5], 1
    %16 = vsyncpa %s15, 0
    loop: start=0, step=1, limit=4
    $region2: #{tpu_custom_call.1} parent=1 // loop_pre_header
      _
    $region3: #{tpu_custom_call.1} parent=1 // loop_header
      %s18 = sphi 0, %s22
      %p19 = scmp.ge.s32.totalorder %s18, 4
      %s25 = sphi 0, %s37
      %s26 = sphi 0, %s33
      %s27 = sphi 0, %s25
      %s28 = sphi 0, %s26
      %s29 = sphi 0, %s27
      %s30 = sphi 0, %s28
      %s40 = sphi 0, %s42
      %s43 = sphi 0, %s40
      %s44 = sphi 0, %s43
      %s60 = sphi 0, %s44
      %s66 = sphi 0, %s68
      %s69 = sphi 0, %s66
      %s70 = sphi 0, %s69
      %s86 = sphi 0, %s70
      %s92 = sphi 0, %s94
      %s95 = sphi 0, %s92
      %s96 = sphi 0, %s95
      %s112 = sphi 0, %s96
      %s118 = sphi 0, %s120
      %s121 = sphi 0, %s118
      %s122 = sphi 0, %s121
      %s138 = sphi 0, %s122
      %s142 = sphi 0, %s142
      %s144 = sphi 0, %s142
      %s145 = sphi 0, %s144
      %s159 = sphi 0, %s145
      %s165 = sphi 0, %s167
      %s168 = sphi 0, %s165
      %s169 = sphi 0, %s168
      %s185 = sphi 0, %s169
    $region4: #{tpu_custom_call.1} parent=1 // loop_header_branch
      %21 = sbr.rel (%p19) target = $region8
    $region5: #{tpu_custom_call.1} parent=1 // loop_body
      %s23 = ssub.s32 %s18, 1
      %s24 = ssub.s32 %s18, 2
      %s31 = sadd.s32 1, %s26
      %p32 = scmp.ge.s32.totalorder %s31, 1
      %s33 = scalar_select %p32, 0, %s31
      %s34 = sadd.s32 1, %s25
      %s35 = scalar_select %p32, %s34, %s25
      %p36 = scmp.ge.s32.totalorder %s35, 2
      %s37 = scalar_select %p36, 0, %s35
      %s38 = ssub.s32 %s25, %s37
      %p39 = scmp.eq.s32.totalorder %s38, 0
      %s41 = sadd.s32 %s40, 1
      %s42 = scalar_select %p39, %s40, %s41
      %p45 = pneg %p39
      %p46 = scmp.eq.s32.totalorder %s18, 1
      %p47 = por %p45, %p46
      %p48 = scmp.ne.s32.totalorder %s40, %s43
      %p49 = scmp.eq.s32.totalorder %s18, 0
      %p50 = por %p48, %p49
      %p51 = scmp.ne.s32.totalorder %s40, %s43
      %p52 = scmp.eq.s32.totalorder %s23, 1
      %p53 = por %p51, %p52
      %p54 = scmp.ne.s32.totalorder %s43, %s44
      %p55 = scmp.eq.s32.totalorder %s23, 0
      %p56 = por %p54, %p55
      %p57 = scmp.ne.s32.totalorder %s43, %s44
      %p58 = scmp.eq.s32.totalorder %s24, 1
      %p59 = por %p57, %p58
      %p61 = scmp.ne.s32.totalorder %s44, %s60
      %p62 = scmp.eq.s32.totalorder %s24, 0
      %p63 = por %p61, %p62
      %s64 = ssub.s32 %s26, %s33
      %p65 = scmp.eq.s32.totalorder %s64, 0
      %s67 = sadd.s32 %s66, 1
      %s68 = scalar_select %p65, %s66, %s67
      %p71 = pneg %p65
      %p72 = scmp.eq.s32.totalorder %s18, 1
      %p73 = por %p71, %p72
      %p74 = scmp.ne.s32.totalorder %s66, %s69
      %p75 = scmp.eq.s32.totalorder %s18, 0
      %p76 = por %p74, %p75
      %p77 = scmp.ne.s32.totalorder %s66, %s69
      %p78 = scmp.eq.s32.totalorder %s23, 1
      %p79 = por %p77, %p78
      %p80 = scmp.ne.s32.totalorder %s69, %s70
      %p81 = scmp.eq.s32.totalorder %s23, 0
      %p82 = por %p80, %p81
      %p83 = scmp.ne.s32.totalorder %s69, %s70
      %p84 = scmp.eq.s32.totalorder %s24, 1
      %p85 = por %p83, %p84
      %p87 = scmp.ne.s32.totalorder %s70, %s86
      %p88 = scmp.eq.s32.totalorder %s24, 0
      %p89 = por %p87, %p88
      %s90 = ssub.s32 %s26, %s33
      %p91 = scmp.eq.s32.totalorder %s90, 0
      %s93 = sadd.s32 %s92, 1
      %s94 = scalar_select %p91, %s92, %s93
      %p97 = pneg %p91
      %p98 = scmp.eq.s32.totalorder %s18, 1
      %p99 = por %p97, %p98
      %p100 = scmp.ne.s32.totalorder %s92, %s95
      %p101 = scmp.eq.s32.totalorder %s18, 0
      %p102 = por %p100, %p101
      %p103 = scmp.ne.s32.totalorder %s92, %s95
      %p104 = scmp.eq.s32.totalorder %s23, 1
      %p105 = por %p103, %p104
      %p106 = scmp.ne.s32.totalorder %s95, %s96
      %p107 = scmp.eq.s32.totalorder %s23, 0
      %p108 = por %p106, %p107
      %p109 = scmp.ne.s32.totalorder %s95, %s96
      %p110 = scmp.eq.s32.totalorder %s24, 1
      %p111 = por %p109, %p110
      %p113 = scmp.ne.s32.totalorder %s96, %s112
      %p114 = scmp.eq.s32.totalorder %s24, 0
      %p115 = por %p113, %p114
      %s116 = ssub.s32 %s26, %s33
      %p117 = scmp.eq.s32.totalorder %s116, 0
      %s119 = sadd.s32 %s118, 1
      %s120 = scalar_select %p117, %s118, %s119
      %p123 = pneg %p117
      %p124 = scmp.eq.s32.totalorder %s18, 1
      %p125 = por %p123, %p124
      %p126 = scmp.ne.s32.totalorder %s118, %s121
      %p127 = scmp.eq.s32.totalorder %s18, 0
      %p128 = por %p126, %p127
      %p129 = scmp.ne.s32.totalorder %s118, %s121
      %p130 = scmp.eq.s32.totalorder %s23, 1
      %p131 = por %p129, %p130
      %p132 = scmp.ne.s32.totalorder %s121, %s122
      %p133 = scmp.eq.s32.totalorder %s23, 0
      %p134 = por %p132, %p133
      %p135 = scmp.ne.s32.totalorder %s121, %s122
      %p136 = scmp.eq.s32.totalorder %s24, 1
      %p137 = por %p135, %p136
      %p139 = scmp.ne.s32.totalorder %s122, %s138
      %p140 = scmp.eq.s32.totalorder %s24, 0
      %p141 = por %p139, %p140
      %s143 = sadd.s32 %s142, 1
      %p146 = scmp.eq.s32.totalorder %s18, 1
      %p147 = scmp.ne.s32.totalorder %s142, %s144
      %p148 = scmp.eq.s32.totalorder %s18, 0
      %p149 = por %p147, %p148
      %p150 = scmp.ne.s32.totalorder %s142, %s144
      %p151 = scmp.eq.s32.totalorder %s23, 1
      %p152 = por %p150, %p151
      %p153 = scmp.ne.s32.totalorder %s144, %s145
      %p154 = scmp.eq.s32.totalorder %s23, 0
      %p155 = por %p153, %p154
      %p156 = scmp.ne.s32.totalorder %s144, %s145
      %p157 = scmp.eq.s32.totalorder %s24, 1
      %p158 = por %p156, %p157
      %p160 = scmp.ne.s32.totalorder %s145, %s159
      %p161 = scmp.eq.s32.totalorder %s24, 0
      %p162 = por %p160, %p161
      %s163 = ssub.s32 %s25, %s37
      %p164 = scmp.eq.s32.totalorder %s163, 0
      %s166 = sadd.s32 %s165, 1
      %s167 = scalar_select %p164, %s165, %s166
      %p170 = pneg %p164
      %p171 = scmp.eq.s32.totalorder %s18, 1
      %p172 = por %p170, %p171
      %p173 = scmp.ne.s32.totalorder %s165, %s168
      %p174 = scmp.eq.s32.totalorder %s18, 0
      %p175 = por %p173, %p174
      %p176 = scmp.ne.s32.totalorder %s165, %s168
      %p177 = scmp.eq.s32.totalorder %s23, 1
      %p178 = por %p176, %p177
      %p179 = scmp.ne.s32.totalorder %s168, %s169
      %p180 = scmp.eq.s32.totalorder %s23, 0
      %p181 = por %p179, %p180
      %p182 = scmp.ne.s32.totalorder %s168, %s169
      %p183 = scmp.eq.s32.totalorder %s24, 1
      %p184 = por %p182, %p183
      %p186 = scmp.ne.s32.totalorder %s169, %s185
      %p187 = scmp.eq.s32.totalorder %s24, 0
      %p188 = por %p186, %p187
      %p189 = scmp.le.s32.totalorder 1, %s18
      %p190 = scmp.lt.s32.totalorder %s18, 3
      %p191 = pnand %p189, %p190
      %p192 = pneg %p191
      // Predicated region
      $region9: #{tpu_custom_call.1} parent=5 // pred_check
        _
      $region10: #{tpu_custom_call.1} parent=5 // pred_check_branch
        %194 = sbr.rel (%p191) target = $region12
      $region11: #{tpu_custom_call.1} parent=5 // pred_region
        %s195 = ssub.s32 %s18, 1
        // Predicated region
        $region13: #{tpu_custom_call.1} parent=11 // pred_check
          %p196 = pneg %p82
        $region14: #{tpu_custom_call.1} parent=11 // pred_check_branch
          %198 = sbr.rel (%p196) target = $region16
        $region15: #{tpu_custom_call.1} parent=11 // pred_region
          %s199 = smul.u32 4, %s28
          %s201 = ssub.s32 4096, 4096
          %202 = vsyncadd [#allocation7], %s201
          %s203 = smul.addr %s199, 64
          %s204 = scalar_lea.hbm %s1, %s203
          %s205 = sshll.u32 [#allocation6], 4
          %s206 = int_to_ptr.vmem [resolvable:$true] %s205
          %211 = dma.hbm_to_vmem [thread:$0]  %s204, 4096, %s206, [#allocation7], 256, 256, 16
        $region16: #{tpu_custom_call.1} parent=11 // pred_fallthru
          _
        // Predicated region
        $region17: #{tpu_custom_call.1} parent=11 // pred_check
          %p212 = pneg %p108
        $region18: #{tpu_custom_call.1} parent=11 // pred_check_branch
          %214 = sbr.rel (%p212) target = $region20
        $region19: #{tpu_custom_call.1} parent=11 // pred_region
          %s215 = smul.u32 4, %s28
          %p216 = scmp.lt.s32.totalorder %s215, 3
          %s217 = scalar_select %p216, %s215, 3
          %s218 = scalar_lea.vmem %s2, %s217
          %s219 = smul.u32 4, %s28
        $region20: #{tpu_custom_call.1} parent=11 // pred_fallthru
          _
        // Predicated region
        $region21: #{tpu_custom_call.1} parent=11 // pred_check
          %p220 = pneg %p134
        $region22: #{tpu_custom_call.1} parent=11 // pred_check_branch
          %222 = sbr.rel (%p220) target = $region24
        $region23: #{tpu_custom_call.1} parent=11 // pred_region
          %s223 = smul.u32 64, %s28
          %s225 = ssub.s32 4096, 4096
          %226 = vsyncadd [#allocation7], %s225
          %s227 = smul.addr %s223, 64
          %s228 = scalar_lea.hbm %s3, %s227
          %s229 = sshll.u32 [#allocation8], 4
          %s230 = int_to_ptr.vmem [resolvable:$true] %s229
          %235 = dma.hbm_to_vmem [thread:$0]  %s228, 4096, %s230, [#allocation7], 64, 64, 4
        $region24: #{tpu_custom_call.1} parent=11 // pred_fallthru
          _
        // Predicated region
        $region25: #{tpu_custom_call.1} parent=11 // pred_check
          %p236 = pneg %p155
        $region26: #{tpu_custom_call.1} parent=11 // pred_check_branch
          %238 = sbr.rel (%p236) target = $region28
        $region27: #{tpu_custom_call.1} parent=11 // pred_region
          _
        $region28: #{tpu_custom_call.1} parent=11 // pred_fallthru
          _
      $region12: #{tpu_custom_call.1} parent=5 // pred_fallthru
        _
      %p239 = scmp.lt.s32.totalorder %s18, 2
      // Predicated region
      $region29: #{tpu_custom_call.1} parent=5 // pred_check
        %p240 = pneg %p239
      $region30: #{tpu_custom_call.1} parent=5 // pred_check_branch
        %242 = sbr.rel (%p240) target = $region32
      $region31: #{tpu_custom_call.1} parent=5 // pred_region
        // Predicated region
        $region33: #{tpu_custom_call.1} parent=31 // pred_check
          %p243 = pneg %p50
        $region34: #{tpu_custom_call.1} parent=31 // pred_check_branch
          %245 = sbr.rel (%p243) target = $region36
        $region35: #{tpu_custom_call.1} parent=31 // pred_region
          %s246 = sand.u32 %s40, 1
          %s247 = scalar_lea.sflag [#allocation4], %s246
          %s248 = sand.u32 %s40, 1
          %s249 = smul.addr %s248, 4
          %s250 = scalar_lea.vmem [#allocation3], %s249
          %s252 = ssub.s32 64, 64
          %253 = vsyncadd %s247, %s252
          %s254 = smul.addr %s25, 64
          %s255 = scalar_lea.hbm %s0, %s254
          %s257 = sshll.u32 %s250, 4
          %s258 = int_to_ptr.vmem [resolvable:$true] %s257
          %260 = dma.hbm_to_vmem [thread:$0]  %s255, 64, %s258, %s247
        $region36: #{tpu_custom_call.1} parent=31 // pred_fallthru
          _
      $region32: #{tpu_custom_call.1} parent=5 // pred_fallthru
        _
      %p261 = scmp.le.s32.totalorder 1, %s18
      %p262 = scmp.lt.s32.totalorder %s18, 3
      %p263 = pnand %p261, %p262
      %p264 = pneg %p263
      // Predicated region
      $region37: #{tpu_custom_call.1} parent=5 // pred_check
        _
      $region38: #{tpu_custom_call.1} parent=5 // pred_check_branch
        %266 = sbr.rel (%p263) target = $region40
      $region39: #{tpu_custom_call.1} parent=5 // pred_region
        %s267 = ssub.s32 %s18, 1
        %s268 = sand.u32 %s43, 1
        %s269 = scalar_lea.sflag [#allocation4], %s268
        %s270 = sand.u32 %s43, 1
        %s271 = smul.addr %s270, 4
        %s272 = scalar_lea.vmem [#allocation3], %s271
        // Predicated region
        $region41: #{tpu_custom_call.1} parent=39 // pred_check
          %p273 = pneg %p56
        $region42: #{tpu_custom_call.1} parent=39 // pred_check_branch
          %275 = sbr.rel (%p273) target = $region44
        $region43: #{tpu_custom_call.1} parent=39 // pred_region
          %276 = dma.done %s269, 64
        $region44: #{tpu_custom_call.1} parent=39 // pred_fallthru
          _
        // Predicated region
        $region45: #{tpu_custom_call.1} parent=39 // pred_check
          %p277 = pneg %p82
        $region46: #{tpu_custom_call.1} parent=39 // pred_check_branch
          %279 = sbr.rel (%p277) target = $region48
        $region47: #{tpu_custom_call.1} parent=39 // pred_region
          %280 = dma.done [#allocation7], 4096
        $region48: #{tpu_custom_call.1} parent=39 // pred_fallthru
          _
        // Predicated region
        $region49: #{tpu_custom_call.1} parent=39 // pred_check
          %p281 = pneg %p134
        $region50: #{tpu_custom_call.1} parent=39 // pred_check_branch
          %283 = sbr.rel (%p281) target = $region52
        $region51: #{tpu_custom_call.1} parent=39 // pred_region
          %284 = dma.done [#allocation7], 4096
        $region52: #{tpu_custom_call.1} parent=39 // pred_fallthru
          _
        %s285 = sand.u32 %s43, 1
        %s286 = scalar_lea.sflag [#allocation4], %s285
        %s287 = sand.u32 %s43, 1
        %s288 = smul.addr %s287, 4
        %s289 = scalar_lea.vmem [#allocation3], %s288
        %p290 = pneg %p56
        %p291 = pneg %p53
        %p292 = pneg %p82
        %p293 = pneg %p79
        %s294 = smul.u32 4, %s28
        %p295 = scmp.lt.s32.totalorder %s294, 3
        %s296 = scalar_select %p295, %s294, 3
        %s297 = scalar_lea.vmem %s2, %s296
        %p298 = pneg %p108
        %p299 = pneg %p105
        %p300 = pneg %p134
        %p301 = pneg %p131
        %p302 = pneg %p155
        %p303 = pneg %p152
        %p304 = pneg %p181
        %p305 = pneg %p178
        %s306 = sand.u32 %s168, 1
        %s307 = scalar_lea.sflag [#allocation5], %s306
        %s308 = sand.u32 %s168, 1
        %s309 = smul.addr %s308, 4
        %s310 = scalar_lea.vmem [#allocation9], %s309
        %s311 = smul.u32 4, %s28
        %s312 = smul.u32 4, %s28
        %p313 = scmp.lt.s32.totalorder %s312, 3
        %s314 = scalar_select %p313, %s312, 3
        %s315 = scalar_lea.vmem %s2, %s314
        %s316 = smul.u32 4, %s28
        %s317 = smul.u32 64, %s28
        %p323 = scmp.eq.s32.totalorder %s28, 0
        // Predicated region
        $region53: #{tpu_custom_call.1} parent=39 // pred_check
          %p324 = pneg %p323
        $region54: #{tpu_custom_call.1} parent=39 // pred_check_branch
          %326 = sbr.rel (%p324) target = $region56
        $region55: #{tpu_custom_call.1} parent=39 // pred_region
          %327 = vst [vmem:[#allocation2] sm:$0xff] 0.0
        $region56: #{tpu_custom_call.1} parent=39 // pred_fallthru
          _
        %v328 = vld [vmem:[%s272] sm:$0xf]
        %v329 = vld [vmem:[#allocation6] sm:$0xff]
        %v330 = vld [vmem:[#allocation6 + $0x8] sm:$0xff]
        %v331 = vld [vmem:[#allocation6 + $0x10] sm:$0xff]
        %v332 = vld [vmem:[#allocation6 + $0x18] sm:$0xff]
        %v333 = vld [vmem:[#allocation6 + $0x20] sm:$0xff]
        %v334 = vld [vmem:[#allocation6 + $0x28] sm:$0xff]
        %v335 = vld [vmem:[#allocation6 + $0x30] sm:$0xff]
        %v336 = vld [vmem:[#allocation6 + $0x38] sm:$0xff]
        %v337 = vld [vmem:[#allocation6 + $0x40] sm:$0xff]
        %v338 = vld [vmem:[#allocation6 + $0x48] sm:$0xff]
        %v339 = vld [vmem:[#allocation6 + $0x50] sm:$0xff]
        %v340 = vld [vmem:[#allocation6 + $0x58] sm:$0xff]
        %v341 = vld [vmem:[#allocation6 + $0x60] sm:$0xff]
        %v342 = vld [vmem:[#allocation6 + $0x68] sm:$0xff]
        %v343 = vld [vmem:[#allocation6 + $0x70] sm:$0xff]
        %v344 = vld [vmem:[#allocation6 + $0x78] sm:$0xff]
        %v345 = vld [vmem:[#allocation6 + $0x80] sm:$0xff]
        %v346 = vld [vmem:[#allocation6 + $0x88] sm:$0xff]
        %v347 = vld [vmem:[#allocation6 + $0x90] sm:$0xff]
        %v348 = vld [vmem:[#allocation6 + $0x98] sm:$0xff]
        %v349 = vld [vmem:[#allocation6 + $0xa0] sm:$0xff]
        %v350 = vld [vmem:[#allocation6 + $0xa8] sm:$0xff]
        %v351 = vld [vmem:[#allocation6 + $0xb0] sm:$0xff]
        %v352 = vld [vmem:[#allocation6 + $0xb8] sm:$0xff]
        %v353 = vld [vmem:[#allocation6 + $0xc0] sm:$0xff]
        %v354 = vld [vmem:[#allocation6 + $0xc8] sm:$0xff]
        %v355 = vld [vmem:[#allocation6 + $0xd0] sm:$0xff]
        %v356 = vld [vmem:[#allocation6 + $0xd8] sm:$0xff]
        %v357 = vld [vmem:[#allocation6 + $0xe0] sm:$0xff]
        %v358 = vld [vmem:[#allocation6 + $0xe8] sm:$0xff]
        %v359 = vld [vmem:[#allocation6 + $0xf0] sm:$0xff]
        %v360 = vld [vmem:[#allocation6 + $0xf8] sm:$0xff]
        %v393 = vunpack.c.l.b16 %v329
        %v394 = vunpack.c.h.b16 %v329
        %v395 = vunpack.c.l.b16 %v330
        %v396 = vunpack.c.h.b16 %v330
        %v397 = vunpack.c.l.b16 %v331
        %v398 = vunpack.c.h.b16 %v331
        %v399 = vunpack.c.l.b16 %v332
        %v400 = vunpack.c.h.b16 %v332
        %v401 = vunpack.c.l.b16 %v333
        %v402 = vunpack.c.h.b16 %v333
        %v403 = vunpack.c.l.b16 %v334
        %v404 = vunpack.c.h.b16 %v334
        %v405 = vunpack.c.l.b16 %v335
        %v406 = vunpack.c.h.b16 %v335
        %v407 = vunpack.c.l.b16 %v336
        %v408 = vunpack.c.h.b16 %v336
        %v409 = vunpack.c.l.b16 %v337
        %v410 = vunpack.c.h.b16 %v337
        %v411 = vunpack.c.l.b16 %v338
        %v412 = vunpack.c.h.b16 %v338
        %v413 = vunpack.c.l.b16 %v339
        %v414 = vunpack.c.h.b16 %v339
        %v415 = vunpack.c.l.b16 %v340
        %v416 = vunpack.c.h.b16 %v340
        %v417 = vunpack.c.l.b16 %v341
        %v418 = vunpack.c.h.b16 %v341
        %v419 = vunpack.c.l.b16 %v342
        %v420 = vunpack.c.h.b16 %v342
        %v421 = vunpack.c.l.b16 %v343
        %v422 = vunpack.c.h.b16 %v343
        %v423 = vunpack.c.l.b16 %v344
        %v424 = vunpack.c.h.b16 %v344
        %v425 = vunpack.c.l.b16 %v345
        %v426 = vunpack.c.h.b16 %v345
        %v427 = vunpack.c.l.b16 %v346
        %v428 = vunpack.c.h.b16 %v346
        %v429 = vunpack.c.l.b16 %v347
        %v430 = vunpack.c.h.b16 %v347
        %v431 = vunpack.c.l.b16 %v348
        %v432 = vunpack.c.h.b16 %v348
        %v433 = vunpack.c.l.b16 %v349
        %v434 = vunpack.c.h.b16 %v349
        %v435 = vunpack.c.l.b16 %v350
        %v436 = vunpack.c.h.b16 %v350
        %v437 = vunpack.c.l.b16 %v351
        %v438 = vunpack.c.h.b16 %v351
        %v439 = vunpack.c.l.b16 %v352
        %v440 = vunpack.c.h.b16 %v352
        %v441 = vunpack.c.l.b16 %v353
        %v442 = vunpack.c.h.b16 %v353
        %v443 = vunpack.c.l.b16 %v354
        %v444 = vunpack.c.h.b16 %v354
        %v445 = vunpack.c.l.b16 %v355
        %v446 = vunpack.c.h.b16 %v355
        %v447 = vunpack.c.l.b16 %v356
        %v448 = vunpack.c.h.b16 %v356
        %v449 = vunpack.c.l.b16 %v357
        %v450 = vunpack.c.h.b16 %v357
        %v451 = vunpack.c.l.b16 %v358
        %v452 = vunpack.c.h.b16 %v358
        %v453 = vunpack.c.l.b16 %v359
        %v454 = vunpack.c.h.b16 %v359
        %v455 = vunpack.c.l.b16 %v360
        %v456 = vunpack.c.h.b16 %v360
        %v457 = vpack.c.b16 %v397, %v393
        %v458 = vpack.c.b16 %v398, %v394
        %v459 = vpack.c.b16 %v399, %v395
        %v460 = vpack.c.b16 %v400, %v396
        %v461 = vpack.c.b16 %v405, %v401
        %v462 = vpack.c.b16 %v406, %v402
        %v463 = vpack.c.b16 %v407, %v403
        %v464 = vpack.c.b16 %v408, %v404
        %v465 = vpack.c.b16 %v413, %v409
        %v466 = vpack.c.b16 %v414, %v410
        %v467 = vpack.c.b16 %v415, %v411
        %v468 = vpack.c.b16 %v416, %v412
        %v469 = vpack.c.b16 %v421, %v417
        %v470 = vpack.c.b16 %v422, %v418
        %v471 = vpack.c.b16 %v423, %v419
        %v472 = vpack.c.b16 %v424, %v420
        %v473 = vpack.c.b16 %v429, %v425
        %v474 = vpack.c.b16 %v430, %v426
        %v475 = vpack.c.b16 %v431, %v427
        %v476 = vpack.c.b16 %v432, %v428
        %v477 = vpack.c.b16 %v437, %v433
        %v478 = vpack.c.b16 %v438, %v434
        %v479 = vpack.c.b16 %v439, %v435
        %v480 = vpack.c.b16 %v440, %v436
        %v481 = vpack.c.b16 %v445, %v441
        %v482 = vpack.c.b16 %v446, %v442
        %v483 = vpack.c.b16 %v447, %v443
        %v484 = vpack.c.b16 %v448, %v444
        %v485 = vpack.c.b16 %v453, %v449
        %v486 = vpack.c.b16 %v454, %v450
        %v487 = vpack.c.b16 %v455, %v451
        %v488 = vpack.c.b16 %v456, %v452
        %521 = vmatprep.subr.bf16.mxu0 %v458
        %522 = vmatpush1.bf16.msra.mxu0 %v457
        %523 = vmatprep.subr.bf16.mxu0 %v462
        %524 = vmatpush1.bf16.msra.mxu0 %v461
        %525 = vmatprep.subr.bf16.mxu0 %v466
        %526 = vmatpush1.bf16.msra.mxu0 %v465
        %527 = vmatprep.subr.bf16.mxu0 %v470
        %528 = vmatpush1.bf16.msra.mxu0 %v469
        %529 = vmatprep.subr.bf16.mxu0 %v474
        %530 = vmatpush1.bf16.msra.mxu0 %v473
        %531 = vmatprep.subr.bf16.mxu0 %v478
        %532 = vmatpush1.bf16.msra.mxu0 %v477
        %533 = vmatprep.subr.bf16.mxu0 %v482
        %534 = vmatpush1.bf16.msra.mxu0 %v481
        %535 = vmatprep.subr.bf16.mxu0 %v486
        %536 = vmatpush1.bf16.msra.mxu0 %v485
        %537 = vmatprep.subr.bf16.mxu0 0
        %538 = vmatpush1.bf16.msra.mxu0 0
        %539 = vmatprep.subr.bf16.mxu0 0
        %540 = vmatpush1.bf16.msra.mxu0 0
        %541 = vmatprep.subr.bf16.mxu0 0
        %542 = vmatpush1.bf16.msra.mxu0 0
        %543 = vmatprep.subr.bf16.mxu0 0
        %544 = vmatpush1.bf16.msra.mxu0 0
        %545 = vmatprep.subr.bf16.mxu0 0
        %546 = vmatpush1.bf16.msra.mxu0 0
        %547 = vmatprep.subr.bf16.mxu0 0
        %548 = vmatpush1.bf16.msra.mxu0 0
        %549 = vmatprep.subr.bf16.mxu0 0
        %550 = vmatpush1.bf16.msra.mxu0 0
        %551 = vmatprep.subr.bf16.mxu0 0
        %552 = vmatpush1.bf16.msra.mxu0 0
        %553 = vmatprep.mubr.bf16.mxu0 0
        %554 = vmatmul.mubr.bf16.gmra.mrb[0].mxu0 %v328
        %v555 = vpop.f32.mrb[0].mxu0
        %v556 = vadd.f32 0.0, %v555
        %v557 = vpop.f32.mrb[0].mxu0
        %v558 = vadd.f32 0.0, %v557
        %v559 = vpop.f32.mrb[0].mxu0
        %v560 = vpop.f32.mrb[0].mxu0
        %561 = vdwg.mxu0
        %562 = vmatprep.subr.bf16.mxu0 %v460
        %563 = vmatpush1.bf16.msra.mxu0 %v459
        %564 = vmatprep.subr.bf16.mxu0 %v464
        %565 = vmatpush1.bf16.msra.mxu0 %v463
        %566 = vmatprep.subr.bf16.mxu0 %v468
        %567 = vmatpush1.bf16.msra.mxu0 %v467
        %568 = vmatprep.subr.bf16.mxu0 %v472
        %569 = vmatpush1.bf16.msra.mxu0 %v471
        %570 = vmatprep.subr.bf16.mxu0 %v476
        %571 = vmatpush1.bf16.msra.mxu0 %v475
        %572 = vmatprep.subr.bf16.mxu0 %v480
        %573 = vmatpush1.bf16.msra.mxu0 %v479
        %574 = vmatprep.subr.bf16.mxu0 %v484
        %575 = vmatpush1.bf16.msra.mxu0 %v483
        %576 = vmatprep.subr.bf16.mxu0 %v488
        %577 = vmatpush1.bf16.msra.mxu0 %v487
        %578 = vmatprep.subr.bf16.mxu0 0
        %579 = vmatpush1.bf16.msra.mxu0 0
        %580 = vmatprep.subr.bf16.mxu0 0
        %581 = vmatpush1.bf16.msra.mxu0 0
        %582 = vmatprep.subr.bf16.mxu0 0
        %583 = vmatpush1.bf16.msra.mxu0 0
        %584 = vmatprep.subr.bf16.mxu0 0
        %585 = vmatpush1.bf16.msra.mxu0 0
        %586 = vmatprep.subr.bf16.mxu0 0
        %587 = vmatpush1.bf16.msra.mxu0 0
        %588 = vmatprep.subr.bf16.mxu0 0
        %589 = vmatpush1.bf16.msra.mxu0 0
        %590 = vmatprep.subr.bf16.mxu0 0
        %591 = vmatpush1.bf16.msra.mxu0 0
        %592 = vmatprep.subr.bf16.mxu0 0
        %593 = vmatpush1.bf16.msra.mxu0 0
        %594 = vmatprep.mubr.bf16.mxu0 0
        %595 = vmatmul.mubr.bf16.gmra.mrb[0].mxu0 %v328
        %v596 = vpop.f32.mrb[0].mxu0
        %v597 = vadd.f32 0.0, %v596
        %v598 = vpop.f32.mrb[0].mxu0
        %v599 = vadd.f32 0.0, %v598
        %v600 = vpop.f32.mrb[0].mxu0
        %v601 = vpop.f32.mrb[0].mxu0
        %602 = vdwg.mxu0
        %v603 = vpack.c.bf16 %v556, %v556
        %v604 = vpack.c.bf16 %v558, %v558
        %v605 = vpack.c.bf16 %v597, %v597
        %v606 = vpack.c.bf16 %v599, %v599
        %v607 = vld [vmem:[%s315] sm:$0xf]
        %v610 = vunpack.c.l.s4 1966171168
        %v611 = vunpack.c.0.s8 %v610
        %v612 = vlaneseq
        %v613 = vshrl.u32 %v612, 7
        %v614 = vsub.s32 %v611, %v613
        %v615 = vrot.slane %v607, %v614
        %v616 = vcombine.high %v615, %v615
        %v618 = vunpack.c.l.s4 1966171168
        %v619 = vunpack.c.0.s8 %v618
        %v620 = vlaneseq
        %v621 = vshrl.u32 %v620, 7
        %v622 = vsub.s32 %v619, %v621
        %v623 = vrot.slane %v615, %v622
        %v625 = vunpack.c.l.s4 1966171168
        %v626 = vunpack.c.0.s8 %v625
        %v627 = vlaneseq
        %v628 = vshrl.u32 %v627, 7
        %v629 = vsub.s32 %v626, %v628
        %v630 = vrot.slane %v616, %v629
        %v631 = vcombine.high %v623, %v623
        %v632 = vcombine.high %v630, %v630
        %v634 = vpack.i.b16 %v623, %v623
        %v636 = vlaneseq
        %v637 = vshrl.u32 %v636, 7
        %v638 = vsub.s32 0, %v637
        %v639 = vrot.slane %v634, %v638
        %v641 = vpack.i.b16 %v630, %v630
        %v643 = vlaneseq
        %v644 = vshrl.u32 %v643, 7
        %v645 = vsub.s32 0, %v644
        %v646 = vrot.slane %v641, %v645
        %v648 = vpack.i.b16 %v631, %v631
        %v650 = vlaneseq
        %v651 = vshrl.u32 %v650, 7
        %v652 = vsub.s32 0, %v651
        %v653 = vrot.slane %v648, %v652
        %v655 = vpack.i.b16 %v632, %v632
        %v657 = vlaneseq
        %v658 = vshrl.u32 %v657, 7
        %v659 = vsub.s32 0, %v658
        %v660 = vrot.slane %v655, %v659
        %v661 = vadd.bf16 %v603, %v639
        %v662 = vadd.bf16 %v604, %v646
        %v663 = vadd.bf16 %v605, %v653
        %v664 = vadd.bf16 %v606, %v660
        %v665 = vmul.bf16 %v661, 1056980736
        %v666 = vmul.bf16 %v662, 1056980736
        %v667 = vmul.bf16 %v663, 1056980736
        %v668 = vmul.bf16 %v664, 1056980736
        %v669 = vmul.bf16 %v661, 1027030327
        %v670 = vmul.bf16 %v662, 1027030327
        %v671 = vmul.bf16 %v663, 1027030327
        %v672 = vmul.bf16 %v664, 1027030327
        %v673 = vmul.bf16 %v669, %v661
        %v674 = vmul.bf16 %v670, %v662
        %v675 = vmul.bf16 %v671, %v663
        %v676 = vmul.bf16 %v672, %v664
        %v677 = vmul.bf16 %v673, %v661
        %v678 = vmul.bf16 %v674, %v662
        %v679 = vmul.bf16 %v675, %v663
        %v680 = vmul.bf16 %v676, %v664
        %v681 = vadd.bf16 %v661, %v677
        %v682 = vadd.bf16 %v662, %v678
        %v683 = vadd.bf16 %v663, %v679
        %v684 = vadd.bf16 %v664, %v680
        %v685 = vmul.bf16 %v681, 1061961548
        %v686 = vmul.bf16 %v682, 1061961548
        %v687 = vmul.bf16 %v683, 1061961548
        %v688 = vmul.bf16 %v684, 1061961548
        %v689 = vtanh.bf16.pop %v685
        %v690 = vtanh.bf16.pop %v686
        %v691 = vtanh.bf16.pop %v687
        %v692 = vtanh.bf16.pop %v688
        %v693 = vadd.bf16 %v689, 1065369472
        %v694 = vadd.bf16 %v690, 1065369472
        %v695 = vadd.bf16 %v691, 1065369472
        %v696 = vadd.bf16 %v692, 1065369472
        %v697 = vmul.bf16 %v665, %v693
        %v698 = vmul.bf16 %v666, %v694
        %v699 = vmul.bf16 %v667, %v695
        %v700 = vmul.bf16 %v668, %v696
        %v701 = vld [vmem:[#allocation2] sm:$0xff]
        %v702 = vld [vmem:[#allocation8] sm:$0xf]
        %v703 = vld [vmem:[#allocation8 + $0x4] sm:$0xf]
        %v704 = vld [vmem:[#allocation8 + $0x8] sm:$0xf]
        %v705 = vld [vmem:[#allocation8 + $0xc] sm:$0xf]
        %v706 = vld [vmem:[#allocation8 + $0x10] sm:$0xf]
        %v707 = vld [vmem:[#allocation8 + $0x14] sm:$0xf]
        %v708 = vld [vmem:[#allocation8 + $0x18] sm:$0xf]
        %v709 = vld [vmem:[#allocation8 + $0x1c] sm:$0xf]
        %v710 = vld [vmem:[#allocation8 + $0x20] sm:$0xf]
        %v711 = vld [vmem:[#allocation8 + $0x24] sm:$0xf]
        %v712 = vld [vmem:[#allocation8 + $0x28] sm:$0xf]
        %v713 = vld [vmem:[#allocation8 + $0x2c] sm:$0xf]
        %v714 = vld [vmem:[#allocation8 + $0x30] sm:$0xf]
        %v715 = vld [vmem:[#allocation8 + $0x34] sm:$0xf]
        %v716 = vld [vmem:[#allocation8 + $0x38] sm:$0xf]
        %v717 = vld [vmem:[#allocation8 + $0x3c] sm:$0xf]
        %v718 = vld [vmem:[#allocation8 + $0x40] sm:$0xf]
        %v719 = vld [vmem:[#allocation8 + $0x44] sm:$0xf]
        %v720 = vld [vmem:[#allocation8 + $0x48] sm:$0xf]
        %v721 = vld [vmem:[#allocation8 + $0x4c] sm:$0xf]
        %v722 = vld [vmem:[#allocation8 + $0x50] sm:$0xf]
        %v723 = vld [vmem:[#allocation8 + $0x54] sm:$0xf]
        %v724 = vld [vmem:[#allocation8 + $0x58] sm:$0xf]
        %v725 = vld [vmem:[#allocation8 + $0x5c] sm:$0xf]
        %v726 = vld [vmem:[#allocation8 + $0x60] sm:$0xf]
        %v727 = vld [vmem:[#allocation8 + $0x64] sm:$0xf]
        %v728 = vld [vmem:[#allocation8 + $0x68] sm:$0xf]
        %v729 = vld [vmem:[#allocation8 + $0x6c] sm:$0xf]
        %v730 = vld [vmem:[#allocation8 + $0x70] sm:$0xf]
        %v731 = vld [vmem:[#allocation8 + $0x74] sm:$0xf]
        %v732 = vld [vmem:[#allocation8 + $0x78] sm:$0xf]
        %v733 = vld [vmem:[#allocation8 + $0x7c] sm:$0xf]
        %v734 = vld [vmem:[#allocation8 + $0x80] sm:$0xf]
        %v735 = vld [vmem:[#allocation8 + $0x84] sm:$0xf]
        %v736 = vld [vmem:[#allocation8 + $0x88] sm:$0xf]
        %v737 = vld [vmem:[#allocation8 + $0x8c] sm:$0xf]
        %v738 = vld [vmem:[#allocation8 + $0x90] sm:$0xf]
        %v739 = vld [vmem:[#allocation8 + $0x94] sm:$0xf]
        %v740 = vld [vmem:[#allocation8 + $0x98] sm:$0xf]
        %v741 = vld [vmem:[#allocation8 + $0x9c] sm:$0xf]
        %v742 = vld [vmem:[#allocation8 + $0xa0] sm:$0xf]
        %v743 = vld [vmem:[#allocation8 + $0xa4] sm:$0xf]
        %v744 = vld [vmem:[#allocation8 + $0xa8] sm:$0xf]
        %v745 = vld [vmem:[#allocation8 + $0xac] sm:$0xf]
        %v746 = vld [vmem:[#allocation8 + $0xb0] sm:$0xf]
        %v747 = vld [vmem:[#allocation8 + $0xb4] sm:$0xf]
        %v748 = vld [vmem:[#allocation8 + $0xb8] sm:$0xf]
        %v749 = vld [vmem:[#allocation8 + $0xbc] sm:$0xf]
        %v750 = vld [vmem:[#allocation8 + $0xc0] sm:$0xf]
        %v751 = vld [vmem:[#allocation8 + $0xc4] sm:$0xf]
        %v752 = vld [vmem:[#allocation8 + $0xc8] sm:$0xf]
        %v753 = vld [vmem:[#allocation8 + $0xcc] sm:$0xf]
        %v754 = vld [vmem:[#allocation8 + $0xd0] sm:$0xf]
        %v755 = vld [vmem:[#allocation8 + $0xd4] sm:$0xf]
        %v756 = vld [vmem:[#allocation8 + $0xd8] sm:$0xf]
        %v757 = vld [vmem:[#allocation8 + $0xdc] sm:$0xf]
        %v758 = vld [vmem:[#allocation8 + $0xe0] sm:$0xf]
        %v759 = vld [vmem:[#allocation8 + $0xe4] sm:$0xf]
        %v760 = vld [vmem:[#allocation8 + $0xe8] sm:$0xf]
        %v761 = vld [vmem:[#allocation8 + $0xec] sm:$0xf]
        %v762 = vld [vmem:[#allocation8 + $0xf0] sm:$0xf]
        %v763 = vld [vmem:[#allocation8 + $0xf4] sm:$0xf]
        %v764 = vld [vmem:[#allocation8 + $0xf8] sm:$0xf]
        %v765 = vld [vmem:[#allocation8 + $0xfc] sm:$0xf]
        %v830 = vunpack.c.l.b16 %v702
        %v831 = vunpack.c.l.b16 %v703
        %v832 = vunpack.c.l.b16 %v704
        %v833 = vunpack.c.l.b16 %v705
        %v834 = vunpack.c.l.b16 %v706
        %v835 = vunpack.c.l.b16 %v707
        %v836 = vunpack.c.l.b16 %v708
        %v837 = vunpack.c.l.b16 %v709
        %v838 = vunpack.c.l.b16 %v710
        %v839 = vunpack.c.l.b16 %v711
        %v840 = vunpack.c.l.b16 %v712
        %v841 = vunpack.c.l.b16 %v713
        %v842 = vunpack.c.l.b16 %v714
        %v843 = vunpack.c.l.b16 %v715
        %v844 = vunpack.c.l.b16 %v716
        %v845 = vunpack.c.l.b16 %v717
        %v846 = vunpack.c.l.b16 %v718
        %v847 = vunpack.c.l.b16 %v719
        %v848 = vunpack.c.l.b16 %v720
        %v849 = vunpack.c.l.b16 %v721
        %v850 = vunpack.c.l.b16 %v722
        %v851 = vunpack.c.l.b16 %v723
        %v852 = vunpack.c.l.b16 %v724
        %v853 = vunpack.c.l.b16 %v725
        %v854 = vunpack.c.l.b16 %v726
        %v855 = vunpack.c.l.b16 %v727
        %v856 = vunpack.c.l.b16 %v728
        %v857 = vunpack.c.l.b16 %v729
        %v858 = vunpack.c.l.b16 %v730
        %v859 = vunpack.c.l.b16 %v731
        %v860 = vunpack.c.l.b16 %v732
        %v861 = vunpack.c.l.b16 %v733
        %v862 = vunpack.c.l.b16 %v734
        %v863 = vunpack.c.l.b16 %v735
        %v864 = vunpack.c.l.b16 %v736
        %v865 = vunpack.c.l.b16 %v737
        %v866 = vunpack.c.l.b16 %v738
        %v867 = vunpack.c.l.b16 %v739
        %v868 = vunpack.c.l.b16 %v740
        %v869 = vunpack.c.l.b16 %v741
        %v870 = vunpack.c.l.b16 %v742
        %v871 = vunpack.c.l.b16 %v743
        %v872 = vunpack.c.l.b16 %v744
        %v873 = vunpack.c.l.b16 %v745
        %v874 = vunpack.c.l.b16 %v746
        %v875 = vunpack.c.l.b16 %v747
        %v876 = vunpack.c.l.b16 %v748
        %v877 = vunpack.c.l.b16 %v749
        %v878 = vunpack.c.l.b16 %v750
        %v879 = vunpack.c.l.b16 %v751
        %v880 = vunpack.c.l.b16 %v752
        %v881 = vunpack.c.l.b16 %v753
        %v882 = vunpack.c.l.b16 %v754
        %v883 = vunpack.c.l.b16 %v755
        %v884 = vunpack.c.l.b16 %v756
        %v885 = vunpack.c.l.b16 %v757
        %v886 = vunpack.c.l.b16 %v758
        %v887 = vunpack.c.l.b16 %v759
        %v888 = vunpack.c.l.b16 %v760
        %v889 = vunpack.c.l.b16 %v761
        %v890 = vunpack.c.l.b16 %v762
        %v891 = vunpack.c.l.b16 %v763
        %v892 = vunpack.c.l.b16 %v764
        %v893 = vunpack.c.l.b16 %v765
        %v894 = vpack.c.b16 %v831, %v830
        %v895 = vpack.c.b16 %v833, %v832
        %v896 = vpack.c.b16 %v835, %v834
        %v897 = vpack.c.b16 %v837, %v836
        %v898 = vpack.c.b16 %v839, %v838
        %v899 = vpack.c.b16 %v841, %v840
        %v900 = vpack.c.b16 %v843, %v842
        %v901 = vpack.c.b16 %v845, %v844
        %v902 = vpack.c.b16 %v847, %v846
        %v903 = vpack.c.b16 %v849, %v848
        %v904 = vpack.c.b16 %v851, %v850
        %v905 = vpack.c.b16 %v853, %v852
        %v906 = vpack.c.b16 %v855, %v854
        %v907 = vpack.c.b16 %v857, %v856
        %v908 = vpack.c.b16 %v859, %v858
        %v909 = vpack.c.b16 %v861, %v860
        %v910 = vpack.c.b16 %v863, %v862
        %v911 = vpack.c.b16 %v865, %v864
        %v912 = vpack.c.b16 %v867, %v866
        %v913 = vpack.c.b16 %v869, %v868
        %v914 = vpack.c.b16 %v871, %v870
        %v915 = vpack.c.b16 %v873, %v872
        %v916 = vpack.c.b16 %v875, %v874
        %v917 = vpack.c.b16 %v877, %v876
        %v918 = vpack.c.b16 %v879, %v878
        %v919 = vpack.c.b16 %v881, %v880
        %v920 = vpack.c.b16 %v883, %v882
        %v921 = vpack.c.b16 %v885, %v884
        %v922 = vpack.c.b16 %v887, %v886
        %v923 = vpack.c.b16 %v889, %v888
        %v924 = vpack.c.b16 %v891, %v890
        %v925 = vpack.c.b16 %v893, %v892
        %958 = vmatprep.subr.bf16.mxu0 0
        %959 = vmatpush1.bf16.msra.mxu0 %v894
        %960 = vmatprep.subr.bf16.mxu0 0
        %961 = vmatpush1.bf16.msra.mxu0 %v895
        %962 = vmatprep.subr.bf16.mxu0 0
        %963 = vmatpush1.bf16.msra.mxu0 %v896
        %964 = vmatprep.subr.bf16.mxu0 0
        %965 = vmatpush1.bf16.msra.mxu0 %v897
        %966 = vmatprep.subr.bf16.mxu0 0
        %967 = vmatpush1.bf16.msra.mxu0 %v898
        %968 = vmatprep.subr.bf16.mxu0 0
        %969 = vmatpush1.bf16.msra.mxu0 %v899
        %970 = vmatprep.subr.bf16.mxu0 0
        %971 = vmatpush1.bf16.msra.mxu0 %v900
        %972 = vmatprep.subr.bf16.mxu0 0
        %973 = vmatpush1.bf16.msra.mxu0 %v901
        %974 = vmatprep.subr.bf16.mxu0 0
        %975 = vmatpush1.bf16.msra.mxu0 %v902
        %976 = vmatprep.subr.bf16.mxu0 0
        %977 = vmatpush1.bf16.msra.mxu0 %v903
        %978 = vmatprep.subr.bf16.mxu0 0
        %979 = vmatpush1.bf16.msra.mxu0 %v904
        %980 = vmatprep.subr.bf16.mxu0 0
        %981 = vmatpush1.bf16.msra.mxu0 %v905
        %982 = vmatprep.subr.bf16.mxu0 0
        %983 = vmatpush1.bf16.msra.mxu0 %v906
        %984 = vmatprep.subr.bf16.mxu0 0
        %985 = vmatpush1.bf16.msra.mxu0 %v907
        %986 = vmatprep.subr.bf16.mxu0 0
        %987 = vmatpush1.bf16.msra.mxu0 %v908
        %988 = vmatprep.subr.bf16.mxu0 0
        %989 = vmatpush1.bf16.msra.mxu0 %v909
        %990 = vmatprep.mubr.bf16.mxu0 %v698
        %991 = vmatmul.mubr.bf16.gmra.mrb[0].mxu0 %v697
        %v992 = vpop.f32.mrb[0].mxu0
        %v993 = vadd.f32 0.0, %v992
        %v994 = vpop.f32.mrb[0].mxu0
        %v995 = vpop.f32.mrb[0].mxu0
        %v996 = vpop.f32.mrb[0].mxu0
        %997 = vdwg.mxu0
        %998 = vmatprep.subr.bf16.mxu0 0
        %999 = vmatpush1.bf16.msra.mxu0 %v910
        %1000 = vmatprep.subr.bf16.mxu0 0
        %1001 = vmatpush1.bf16.msra.mxu0 %v911
        %1002 = vmatprep.subr.bf16.mxu0 0
        %1003 = vmatpush1.bf16.msra.mxu0 %v912
        %1004 = vmatprep.subr.bf16.mxu0 0
        %1005 = vmatpush1.bf16.msra.mxu0 %v913
        %1006 = vmatprep.subr.bf16.mxu0 0
        %1007 = vmatpush1.bf16.msra.mxu0 %v914
        %1008 = vmatprep.subr.bf16.mxu0 0
        %1009 = vmatpush1.bf16.msra.mxu0 %v915
        %1010 = vmatprep.subr.bf16.mxu0 0
        %1011 = vmatpush1.bf16.msra.mxu0 %v916
        %1012 = vmatprep.subr.bf16.mxu0 0
        %1013 = vmatpush1.bf16.msra.mxu0 %v917
        %1014 = vmatprep.subr.bf16.mxu0 0
        %1015 = vmatpush1.bf16.msra.mxu0 %v918
        %1016 = vmatprep.subr.bf16.mxu0 0
        %1017 = vmatpush1.bf16.msra.mxu0 %v919
        %1018 = vmatprep.subr.bf16.mxu0 0
        %1019 = vmatpush1.bf16.msra.mxu0 %v920
        %1020 = vmatprep.subr.bf16.mxu0 0
        %1021 = vmatpush1.bf16.msra.mxu0 %v921
        %1022 = vmatprep.subr.bf16.mxu0 0
        %1023 = vmatpush1.bf16.msra.mxu0 %v922
        %1024 = vmatprep.subr.bf16.mxu0 0
        %1025 = vmatpush1.bf16.msra.mxu0 %v923
        %1026 = vmatprep.subr.bf16.mxu0 0
        %1027 = vmatpush1.bf16.msra.mxu0 %v924
        %1028 = vmatprep.subr.bf16.mxu0 0
        %1029 = vmatpush1.bf16.msra.mxu0 %v925
        %1030 = vmatprep.mubr.bf16.mxu0 %v700
        %1031 = vmatmul.mubr.bf16.gmra.mrb[0].mxu0 %v699
        %v1032 = vpop.f32.mrb[0].mxu0
        %v1033 = vadd.f32 %v993, %v1032
        %v1034 = vpop.f32.mrb[0].mxu0
        %v1035 = vpop.f32.mrb[0].mxu0
        %v1036 = vpop.f32.mrb[0].mxu0
        %1037 = vdwg.mxu0
        %v1038 = vadd.f32 %v701, %v1033
        %1039 = vst [vmem:[#allocation2] sm:$0xff] %v1038
        // Predicated region
        $region57: #{tpu_custom_call.1} parent=39 // pred_check
          %p1040 = pneg %p323
        $region58: #{tpu_custom_call.1} parent=39 // pred_check_branch
          %1042 = sbr.rel (%p1040) target = $region60
        $region59: #{tpu_custom_call.1} parent=39 // pred_region
          %v1043 = vld [vmem:[#allocation2] sm:$0xff]
          %v1044 = vld [vmem:[%s4] sm:$0x1]
          %v1046 = vlaneseq
          %v1047 = vshrl.u32 %v1046, 7
          %v1048 = vsub.s32 0, %v1047
          %v1049 = vrot.slane %v1044, %v1048
          %v1051 = vadd.f32 %v1043, %v1049
          %v1052 = vpack.c.bf16 %v1051, %v1051
          %1053 = vst [vmem:[%s310] sm:$0xf] %v1052
        $region60: #{tpu_custom_call.1} parent=39 // pred_fallthru
          _
        %s1054 = sand.u32 %s168, 1
        %s1055 = scalar_lea.sflag [#allocation5], %s1054
        %s1056 = sand.u32 %s168, 1
        %s1057 = smul.addr %s1056, 4
        %s1058 = scalar_lea.vmem [#allocation9], %s1057
        // Predicated region
        $region61: #{tpu_custom_call.1} parent=39 // pred_check
          %p1059 = pneg %p178
        $region62: #{tpu_custom_call.1} parent=39 // pred_check_branch
          %1061 = sbr.rel (%p1059) target = $region64
        $region63: #{tpu_custom_call.1} parent=39 // pred_region
          %s1063 = ssub.s32 64, 64
          %1064 = vsyncadd %s1055, %s1063
          %s1065 = smul.addr %s27, 64
          %s1066 = scalar_lea.hbm %s5, %s1065
          %s1068 = sshll.u32 %s1058, 4
          %s1069 = int_to_ptr.vmem [resolvable:$true] %s1068
          %1071 = dma.vmem_to_hbm [thread:$0]  %s1069, 64, %s1066, %s1055
        $region64: #{tpu_custom_call.1} parent=39 // pred_fallthru
          _
      $region40: #{tpu_custom_call.1} parent=5 // pred_fallthru
        _
      %p1072 = scmp.le.s32.totalorder 2, %s18
      // Predicated region
      $region65: #{tpu_custom_call.1} parent=5 // pred_check
        %p1073 = pneg %p1072
      $region66: #{tpu_custom_call.1} parent=5 // pred_check_branch
        %1075 = sbr.rel (%p1073) target = $region68
      $region67: #{tpu_custom_call.1} parent=5 // pred_region
        %s1076 = ssub.s32 %s18, 2
        // Predicated region
        $region69: #{tpu_custom_call.1} parent=67 // pred_check
          %p1077 = pneg %p184
        $region70: #{tpu_custom_call.1} parent=67 // pred_check_branch
          %1079 = sbr.rel (%p1077) target = $region72
        $region71: #{tpu_custom_call.1} parent=67 // pred_region
          %s1080 = sand.u32 %s169, 1
          %s1081 = scalar_lea.sflag [#allocation5], %s1080
          %s1082 = sand.u32 %s169, 1
          %s1083 = smul.addr %s1082, 4
          %s1084 = scalar_lea.vmem [#allocation9], %s1083
          %1085 = dma.done %s1081, 64
        $region72: #{tpu_custom_call.1} parent=67 // pred_fallthru
          _
      $region68: #{tpu_custom_call.1} parent=5 // pred_fallthru
        _
    $region6: #{tpu_custom_call.1} parent=1 // loop_footer
      %s22 = sadd.s32 1, %s18
    $region7: #{tpu_custom_call.1} parent=1 // loop_footer_branch
      %17 = sbr.rel target = $region3
    $region8: #{tpu_custom_call.1} parent=1 // loop_exit
      _
    %1086 = vsyncpa [#allocation4], 1
    %s1087 = scalar_lea.sflag [#allocation4], 1
    %1088 = vsyncpa %s1087, 1
    %1089 = vsyncpa [#allocation7], 1
    %1090 = vsyncpa [#allocation5], 1
    %s1091 = scalar_lea.sflag [#allocation5], 1
    %1092 = vsyncpa %s1091, 1

</llo_original>
